<compile_context>
chip_gen: v5e
topology: v5e:2x2
jax: 0.10.0
libtpu: 0.0.40
codegen_flags: <defaults>
</compile_context>

<pallas_src>
from functools import partial

import jax
import jax.numpy as jnp
from jax.experimental import pallas as pl
from jax.experimental.pallas import tpu as pltpu

HIDDEN = 400                     # fixed by the module (nn.Linear(genes, 400))
_VMEM_LIMIT = 32 * 1024 * 1024   # safe on v5e/v6e (128 MiB) and v7x (64 MiB physical)


def _round_up(a, b):
    return (a + b - 1) // b * b


# ---------------------------------------------------------------------------
# Fused kernel.  Grid = (nk + nn,), sequential ("arbitrary"):
#   phase 1 (i in [0, nk)) : h_acc += x[:, k] @ W1[k, :]     (K streamed)
#                            on last k: h = relu(h_acc + b1) (stays in VMEM)
#   phase 2 (i in [nk, ..)): out[:, n] = relu(h @ W2[:, n] + b2[:, n])  (N streamed)
# ---------------------------------------------------------------------------
def _fused_kernel(nk, x_ref, w1_ref, b1_ref, w2_ref, b2_ref, o_ref, h_ref):
    i = pl.program_id(0)

    @pl.when(i == 0)
    def _():
        h_ref[...] = jnp.zeros_like(h_ref)

    @pl.when(i < nk)
    def _():
        h_ref[...] += jnp.dot(
            x_ref[...], w1_ref[...], preferred_element_type=jnp.float32
        )

    @pl.when(i == nk - 1)
    def _():
        h_ref[...] = jnp.maximum(h_ref[...] + b1_ref[...], 0.0)

    @pl.when(i >= nk)
    def _():
        h_bf = h_ref[...].astype(jnp.bfloat16)
        out = jnp.dot(h_bf, w2_ref[...], preferred_element_type=jnp.float32)
        o_ref[...] = jnp.maximum(out + b2_ref[...], 0.0).astype(o_ref.dtype)


# ---------------------------------------------------------------------------
# One-time parameter formatting (hoisted out of the forward pass).
# ---------------------------------------------------------------------------
def prepare_params(w1, b1, w2, b2, *, tk=2048, tn=2048):
    """Pad genes to tile multiples and cast weights to bf16 ONCE.

    w1: [genes, 400], b1: [1, 400], w2: [400, genes], b2: [1, genes].
    """
    genes = w1.shape[0]
    assert w1.shape == (genes, HIDDEN) and w2.shape == (HIDDEN, genes)
    tk = int(min(tk, _round_up(genes, 256)))   # multiples of 256 -> full MXU passes
    tn = int(min(tn, _round_up(genes, 256)))
    gk = _round_up(genes, tk)
    gn = _round_up(genes, tn)

    w1p = jnp.zeros((gk, HIDDEN), jnp.bfloat16).at[:genes, :].set(
        w1.astype(jnp.bfloat16))
    b1p = jnp.asarray(b1, jnp.float32).reshape(1, HIDDEN)
    w2p = jnp.zeros((HIDDEN, gn), jnp.bfloat16).at[:, :genes].set(
        w2.astype(jnp.bfloat16))
    b2p = jnp.zeros((1, gn), jnp.float32).at[:, :genes].set(
        jnp.asarray(b2, jnp.float32).reshape(1, genes))
    return dict(w1=w1p, b1=b1p, w2=w2p, b2=b2p, genes=genes, tk=tk, tn=tn)


@partial(jax.jit, static_argnames=("genes", "tk", "tn"))
def _forward_impl(x, w1p, b1p, w2p, b2p, *, genes, tk, tn):
    B = x.shape[0]
    gk = w1p.shape[0]          # padded genes (layer-1 reduction axis)
    gn = w2p.shape[1]          # padded genes (layer-2 output axis)
    nk = gk // tk
    nn = gn // tn
    bp = max(_round_up(B, 16), 16)   # bf16 packs 2 rows/sublane -> pad batch to 16

    # Pad + cast the (tiny) activation per call; zero pad is exact.
    xb = jnp.zeros((bp, gk), jnp.bfloat16).at[:B, :genes].set(
        x.astype(jnp.bfloat16))

    out_pad = pl.pallas_call(
        partial(_fused_kernel, nk),
        out_shape=jax.ShapeDtypeStruct((bp, gn), jnp.float32),
        grid_spec=pltpu.PrefetchScalarGridSpec(
            num_scalar_prefetch=0,
            grid=(nk + nn,),
            in_specs=[
                # phase 1 inputs: clamp to last K block during phase 2 -> no re-DMA
                pl.BlockSpec((bp, tk), lambda i: (0, jnp.minimum(i, nk - 1))),
                pl.BlockSpec((tk, HIDDEN), lambda i: (jnp.minimum(i, nk - 1), 0)),
                pl.BlockSpec((1, HIDDEN), lambda i: (0, 0)),
                # phase 2 inputs: clamp to block 0 during phase 1 -> prefetched early
                pl.BlockSpec((HIDDEN, tn), lambda i: (0, jnp.maximum(i - nk, 0))),
                pl.BlockSpec((1, tn), lambda i: (0, jnp.maximum(i - nk, 0))),
            ],
            out_specs=pl.BlockSpec((bp, tn), lambda i: (0, jnp.maximum(i - nk, 0))),
            scratch_shapes=[pltpu.VMEM((bp, HIDDEN), jnp.float32)],  # h lives here
        ),
        compiler_params=pltpu.CompilerParams(
            dimension_semantics=("arbitrary",),
            vmem_limit_bytes=_VMEM_LIMIT,
        ),
    )(xb, w1p, b1p, w2p, b2p)

    return out_pad[:B, :genes].astype(x.dtype)


def wdecoder_forward(x, params):
    """x: [B, genes]; params from prepare_params()."""
    return _forward_impl(
        x, params["w1"], params["b1"], params["w2"], params["b2"],
        genes=params["genes"], tk=params["tk"], tn=params["tn"],
    )


# ---------------------------------------------------------------------------
# Reference + init (mimic nn.Linear's uniform(-1/sqrt(fan_in), 1/sqrt(fan_in))).
# ---------------------------------------------------------------------------
def init_params(key, genes):
    k1, k2, k3, k4 = jax.random.split(key, 4)
    bound1 = 1.0 / jnp.sqrt(genes)
    bound2 = 1.0 / jnp.sqrt(HIDDEN)
    # stored pre-transposed: [in, out]
    w1 = jax.random.uniform(k1, (genes, HIDDEN), jnp.float32, -bound1, bound1)
    b1 = jax.random.uniform(k2, (1, HIDDEN), jnp.float32, -bound1, bound1)
    w2 = jax.random.uniform(k3, (HIDDEN, genes), jnp.float32, -bound2, bound2)
    b2 = jax.random.uniform(k4, (1, genes), jnp.float32, -bound2, bound2)
    return w1, b1, w2, b2


def reference_forward(x, w1, b1, w2, b2):
    h = jnp.maximum(x @ w1 + b1, 0.0)
    return jnp.maximum(h @ w2 + b2, 0.0)


if __name__ == "__main__":
    key = jax.random.PRNGKey(0)
    k_x, k_p = jax.random.split(key)

    batch, genes = 8, 32
    x = jax.random.normal(k_x, (batch, genes), jnp.float32)
    w1, b1, w2, b2 = init_params(k_p, genes)

    params = prepare_params(w1, b1, w2, b2)          # one-time pad + bf16 cast
    out = wdecoder_forward(x, params)
    out = jax.block_until_ready(out)

    ref = reference_forward(x, w1, b1, w2, b2)
    assert out.shape == (batch, genes)
    # bf16 matmul inputs (f32 accumulation) -> loosened tolerance vs f32 reference.
    assert jnp.allclose(out, ref, atol=3e-2, rtol=3e-2), "mismatch vs reference"

    print("KERNEL_OK")
</pallas_src>

<mosaic_0001>
module attributes {stable_mosaic.version = 11 : i64} {
  func.func @_fused_kernel(%arg0: i32, %arg1: memref<16x256xbf16, #tpu.memory_space<vmem>>, %arg2: memref<256x400xbf16, #tpu.memory_space<vmem>>, %arg3: memref<1x400xf32, #tpu.memory_space<vmem>>, %arg4: memref<400x256xbf16, #tpu.memory_space<vmem>>, %arg5: memref<1x256xf32, #tpu.memory_space<vmem>>, %arg6: memref<16x256xf32, #tpu.memory_space<vmem>>, %arg7: memref<16x400xf32, #tpu.memory_space<vmem>>) attributes {dimension_semantics = [#tpu.dimension_semantics<arbitrary>], iteration_bounds = array<i64: 2>, scalar_prefetch = 0 : i64, scratch_operands = 1 : i64, tpu.core_type = #tpu.core_type<tc>, window_params = [{transform_indices = @transform_0, window_bounds = array<i64: 16, 256>}, {transform_indices = @transform_1, window_bounds = array<i64: 256, 400>}, {pipeline_mode = #tpu.pipeline_mode<synchronous>, transform_indices = @transform_2, window_bounds = array<i64: 1, 400>}, {transform_indices = @transform_3, window_bounds = array<i64: 400, 256>}, {transform_indices = @transform_4, window_bounds = array<i64: 1, 256>}, {transform_indices = @transform_5, window_bounds = array<i64: 16, 256>}]} {
    %c0_i32 = arith.constant 0 : i32
    %0 = arith.cmpi eq, %arg0, %c0_i32 : i32
    %1 = arith.extui %0 : i1 to i32
    %c0_i32_0 = arith.constant 0 : i32
    %2 = arith.cmpi ne, %1, %c0_i32_0 : i32
    scf.if %2 {
      %cst = arith.constant 0.000000e+00 : f32
      %12 = vector.broadcast %cst : f32 to vector<16x400xf32>
      %c0 = arith.constant 0 : index
      %c0_6 = arith.constant 0 : index
      %13 = vector.load %arg7[%c0, %c0_6] : memref<16x400xf32, #tpu.memory_space<vmem>>, vector<16x400xf32>
      tpu.vector_store %arg7[%c0, %c0_6], %12 {strides = array<i32>} : memref<16x400xf32, #tpu.memory_space<vmem>>, vector<16x400xf32>,
    } else {
    }
    %c1_i32 = arith.constant 1 : i32
    %3 = arith.cmpi slt, %arg0, %c1_i32 : i32
    %4 = arith.extui %3 : i1 to i32
    %c0_i32_1 = arith.constant 0 : i32
    %5 = arith.cmpi ne, %4, %c0_i32_1 : i32
    scf.if %5 {
      %c0 = arith.constant 0 : index
      %c0_6 = arith.constant 0 : index
      %12 = vector.load %arg7[%c0, %c0_6] : memref<16x400xf32, #tpu.memory_space<vmem>>, vector<16x400xf32>
      %c0_7 = arith.constant 0 : index
      %c0_8 = arith.constant 0 : index
      %13 = vector.load %arg1[%c0_7, %c0_8] : memref<16x256xbf16, #tpu.memory_space<vmem>>, vector<16x256xbf16>
      %c0_9 = arith.constant 0 : index
      %c0_10 = arith.constant 0 : index
      %14 = vector.load %arg2[%c0_9, %c0_10] : memref<256x400xbf16, #tpu.memory_space<vmem>>, vector<256x400xbf16>
      %cst = arith.constant dense<0.000000e+00> : vector<16x400xf32>
      %15 = tpu.matmul %13, %14, %cst {dimension_numbers = #tpu.dot_dimension_numbers<[1], [0], [0], [1], [0, 0, 1, 1], [], []>} : vector<16x256xbf16>, vector<256x400xbf16>, vector<16x400xf32> -> vector<16x400xf32>
      %16 = arith.addf %12, %15 : vector<16x400xf32>
      %c0_11 = arith.constant 0 : index
      %c0_12 = arith.constant 0 : index
      %17 = vector.load %arg7[%c0_11, %c0_12] : memref<16x400xf32, #tpu.memory_space<vmem>>, vector<16x400xf32>
      tpu.vector_store %arg7[%c0_11, %c0_12], %16 {strides = array<i32>} : memref<16x400xf32, #tpu.memory_space<vmem>>, vector<16x400xf32>,
    } else {
    }
    %c0_i32_2 = arith.constant 0 : i32
    %6 = arith.cmpi eq, %arg0, %c0_i32_2 : i32
    %7 = arith.extui %6 : i1 to i32
    %c0_i32_3 = arith.constant 0 : i32
    %8 = arith.cmpi ne, %7, %c0_i32_3 : i32
    scf.if %8 {
      %c0 = arith.constant 0 : index
      %c0_6 = arith.constant 0 : index
      %12 = vector.load %arg7[%c0, %c0_6] : memref<16x400xf32, #tpu.memory_space<vmem>>, vector<16x400xf32>
      %c0_7 = arith.constant 0 : index
      %c0_8 = arith.constant 0 : index
      %13 = vector.load %arg3[%c0_7, %c0_8] : memref<1x400xf32, #tpu.memory_space<vmem>>, vector<1x400xf32>
      %14 = vector.broadcast %13 : vector<1x400xf32> to vector<16x400xf32>
      %15 = arith.addf %12, %14 : vector<16x400xf32>
      %cst = arith.constant 0.000000e+00 : f32
      %16 = vector.broadcast %cst : f32 to vector<16x400xf32>
      %17 = arith.maximumf %15, %16 : vector<16x400xf32>
      %c0_9 = arith.constant 0 : index
      %c0_10 = arith.constant 0 : index
      %18 = vector.load %arg7[%c0_9, %c0_10] : memref<16x400xf32, #tpu.memory_space<vmem>>, vector<16x400xf32>
      tpu.vector_store %arg7[%c0_9, %c0_10], %17 {strides = array<i32>} : memref<16x400xf32, #tpu.memory_space<vmem>>, vector<16x400xf32>,
    } else {
    }
    %c1_i32_4 = arith.constant 1 : i32
    %9 = arith.cmpi sge, %arg0, %c1_i32_4 : i32
    %10 = arith.extui %9 : i1 to i32
    %c0_i32_5 = arith.constant 0 : i32
    %11 = arith.cmpi ne, %10, %c0_i32_5 : i32
    scf.if %11 {
      %c0 = arith.constant 0 : index
      %c0_6 = arith.constant 0 : index
      %12 = vector.load %arg7[%c0, %c0_6] : memref<16x400xf32, #tpu.memory_space<vmem>>, vector<16x400xf32>
      %13 = arith.truncf %12 : vector<16x400xf32> to vector<16x400xbf16>
      %c0_7 = arith.constant 0 : index
      %c0_8 = arith.constant 0 : index
      %14 = vector.load %arg4[%c0_7, %c0_8] : memref<400x256xbf16, #tpu.memory_space<vmem>>, vector<400x256xbf16>
      %cst = arith.constant dense<0.000000e+00> : vector<16x256xf32>
      %15 = tpu.matmul %13, %14, %cst {dimension_numbers = #tpu.dot_dimension_numbers<[1], [0], [0], [1], [0, 0, 1, 1], [], []>} : vector<16x400xbf16>, vector<400x256xbf16>, vector<16x256xf32> -> vector<16x256xf32>
      %c0_9 = arith.constant 0 : index
      %c0_10 = arith.constant 0 : index
      %16 = vector.load %arg5[%c0_9, %c0_10] : memref<1x256xf32, #tpu.memory_space<vmem>>, vector<1x256xf32>
      %17 = vector.broadcast %16 : vector<1x256xf32> to vector<16x256xf32>
      %18 = arith.addf %15, %17 : vector<16x256xf32>
      %cst_11 = arith.constant 0.000000e+00 : f32
      %19 = vector.broadcast %cst_11 : f32 to vector<16x256xf32>
      %20 = arith.maximumf %18, %19 : vector<16x256xf32>
      %c0_12 = arith.constant 0 : index
      %c0_13 = arith.constant 0 : index
      %21 = vector.load %arg6[%c0_12, %c0_13] : memref<16x256xf32, #tpu.memory_space<vmem>>, vector<16x256xf32>
      tpu.vector_store %arg6[%c0_12, %c0_13], %20 {strides = array<i32>} : memref<16x256xf32, #tpu.memory_space<vmem>>, vector<16x256xf32>,
    } else {
    }
    return
  }
  func.func @transform_0(%arg0: i32) -> (i32, i32) {
    %c0_i32 = arith.constant 0 : i32
    %0 = arith.minsi %arg0, %c0_i32 : i32
    %c0_i32_0 = arith.constant 0 : i32
    %c0_i32_1 = arith.constant 0 : i32
    return %c0_i32_0, %0 : i32, i32
  }
  func.func @transform_1(%arg0: i32) -> (i32, i32) {
    %c0_i32 = arith.constant 0 : i32
    %0 = arith.minsi %arg0, %c0_i32 : i32
    %c0_i32_0 = arith.constant 0 : i32
    %c0_i32_1 = arith.constant 0 : i32
    return %0, %c0_i32_0 : i32, i32
  }
  func.func @transform_2(%arg0: i32) -> (i32, i32) {
    %c0_i32 = arith.constant 0 : i32
    %c0_i32_0 = arith.constant 0 : i32
    %c0_i32_1 = arith.constant 0 : i32
    return %c0_i32, %c0_i32_0 : i32, i32
  }
  func.func @transform_3(%arg0: i32) -> (i32, i32) {
    %c1_i32 = arith.constant 1 : i32
    %0 = arith.subi %arg0, %c1_i32 : i32
    %c0_i32 = arith.constant 0 : i32
    %1 = arith.maxsi %0, %c0_i32 : i32
    %c0_i32_0 = arith.constant 0 : i32
    %c0_i32_1 = arith.constant 0 : i32
    return %c0_i32_0, %1 : i32, i32
  }
  func.func @transform_4(%arg0: i32) -> (i32, i32) {
    %c1_i32 = arith.constant 1 : i32
    %0 = arith.subi %arg0, %c1_i32 : i32
    %c0_i32 = arith.constant 0 : i32
    %1 = arith.maxsi %0, %c0_i32 : i32
    %c0_i32_0 = arith.constant 0 : i32
    %c0_i32_1 = arith.constant 0 : i32
    return %c0_i32_0, %1 : i32, i32
  }
  func.func @transform_5(%arg0: i32) -> (i32, i32) {
    %c1_i32 = arith.constant 1 : i32
    %0 = arith.subi %arg0, %c1_i32 : i32
    %c0_i32 = arith.constant 0 : i32
    %1 = arith.maxsi %0, %c0_i32 : i32
    %c0_i32_0 = arith.constant 0 : i32
    %c0_i32_1 = arith.constant 0 : i32
    return %c0_i32_0, %1 : i32, i32
  }
}

</mosaic_0001>

<llo_original>
// kernel: _forward_impl.1
$region0: #{_forward_impl.1}
  #allocation0 [shape = 'u32[]', space=smem, size = 0x4, offset = 0x4, fixed_abs, tag = 'smem constant byte address 0x4 - core index']
  #allocation1 [shape = 'u32[72,128]{1,0:T(1,128)}', space=vmem, size = 0x9000, scoped, tag = 'internal scratch']
  #allocation2 [shape = 'f32[16,400]{1,0:T(8,128)}', space=vmem, size = 0x8000, scoped, tag = 'scratch operand']
  %s0 = inlined_call_operand.vmem [shape: bf16[16,256], index: 0, kind: input, shape index: {}]
  %s1 = inlined_call_operand.vmem [shape: bf16[256,400], index: 1, kind: input, shape index: {}]
  %s2 = inlined_call_operand.vmem [shape: f32[1,400], index: 2, kind: input, shape index: {}]
  %s3 = inlined_call_operand.vmem [shape: bf16[400,256], index: 3, kind: input, shape index: {}]
  %s4 = inlined_call_operand.vmem [shape: f32[1,256], index: 4, kind: input, shape index: {}]
  %s5 = inlined_call_operand.vmem [shape: f32[16,256], index: 5, kind: output, shape index: {}]
  %s6 = sld [smem:[#allocation0]]
  $region69: #{_forward_impl.1} parent=0
    _
  %s8 = ssub.s32 1, %s6
  %s9 = scalar_select 0, %s8, %s6
  loop: start=0, step=1, limit=4
  $region2: #{_forward_impl.1} parent=0 // loop_pre_header
    _
  $region3: #{_forward_impl.1} parent=0 // loop_header
    %s11 = sphi 0, %s15
    %p12 = scmp.ge.s32.totalorder %s11, 4
    %s25 = sphi 0, %s27
    %s28 = sphi 0, %s25
    %s29 = sphi 0, %s28
    %s45 = sphi 0, %s29
    %s55 = sphi 0, %s57
    %s58 = sphi 0, %s55
    %s59 = sphi 0, %s58
    %s75 = sphi 0, %s59
    %s79 = sphi 0, %s79
    %s81 = sphi 0, %s79
    %s82 = sphi 0, %s81
    %s96 = sphi 0, %s82
    %s108 = sphi 0, %s110
    %s111 = sphi 0, %s108
    %s112 = sphi 0, %s111
    %s128 = sphi 0, %s112
    %s140 = sphi 0, %s142
    %s143 = sphi 0, %s140
    %s144 = sphi 0, %s143
    %s160 = sphi 0, %s144
    %s172 = sphi 0, %s174
    %s175 = sphi 0, %s172
    %s176 = sphi 0, %s175
    %s192 = sphi 0, %s176
  $region4: #{_forward_impl.1} parent=0 // loop_header_branch
    %14 = sbr.rel (%p12) target = $region8
  $region5: #{_forward_impl.1} parent=0 // loop_body
    %s16 = ssub.s32 %s11, 1
    %s17 = ssub.s32 %s11, 2
    %s18 = sadd.s32 %s11, 1
    %p19 = scmp.lt.s32.totalorder %s11, 0
    %s20 = scalar_select %p19, %s11, 0
    %p21 = scmp.lt.s32.totalorder %s18, 0
    %s22 = scalar_select %p21, %s18, 0
    %s23 = ssub.s32 %s20, %s22
    %p24 = scmp.eq.s32.totalorder %s23, 0
    %s26 = sadd.s32 %s25, 1
    %s27 = scalar_select %p24, %s25, %s26
    %p30 = pneg %p24
    %p31 = scmp.eq.s32.totalorder %s11, 1
    %p32 = por %p30, %p31
    %p33 = scmp.ne.s32.totalorder %s25, %s28
    %p34 = scmp.eq.s32.totalorder %s11, 0
    %p35 = por %p33, %p34
    %p36 = scmp.ne.s32.totalorder %s25, %s28
    %p37 = scmp.eq.s32.totalorder %s16, 1
    %p38 = por %p36, %p37
    %p39 = scmp.ne.s32.totalorder %s28, %s29
    %p40 = scmp.eq.s32.totalorder %s16, 0
    %p41 = por %p39, %p40
    %p42 = scmp.ne.s32.totalorder %s28, %s29
    %p43 = scmp.eq.s32.totalorder %s17, 1
    %p44 = por %p42, %p43
    %p46 = scmp.ne.s32.totalorder %s29, %s45
    %p47 = scmp.eq.s32.totalorder %s17, 0
    %p48 = por %p46, %p47
    %p49 = scmp.lt.s32.totalorder %s11, 0
    %s50 = scalar_select %p49, %s11, 0
    %p51 = scmp.lt.s32.totalorder %s18, 0
    %s52 = scalar_select %p51, %s18, 0
    %s53 = ssub.s32 %s50, %s52
    %p54 = scmp.eq.s32.totalorder %s53, 0
    %s56 = sadd.s32 %s55, 1
    %s57 = scalar_select %p54, %s55, %s56
    %p60 = pneg %p54
    %p61 = scmp.eq.s32.totalorder %s11, 1
    %p62 = por %p60, %p61
    %p63 = scmp.ne.s32.totalorder %s55, %s58
    %p64 = scmp.eq.s32.totalorder %s11, 0
    %p65 = por %p63, %p64
    %p66 = scmp.ne.s32.totalorder %s55, %s58
    %p67 = scmp.eq.s32.totalorder %s16, 1
    %p68 = por %p66, %p67
    %p69 = scmp.ne.s32.totalorder %s58, %s59
    %p70 = scmp.eq.s32.totalorder %s16, 0
    %p71 = por %p69, %p70
    %p72 = scmp.ne.s32.totalorder %s58, %s59
    %p73 = scmp.eq.s32.totalorder %s17, 1
    %p74 = por %p72, %p73
    %p76 = scmp.ne.s32.totalorder %s59, %s75
    %p77 = scmp.eq.s32.totalorder %s17, 0
    %p78 = por %p76, %p77
    %s80 = sadd.s32 %s79, 1
    %p83 = scmp.eq.s32.totalorder %s11, 1
    %p84 = scmp.ne.s32.totalorder %s79, %s81
    %p85 = scmp.eq.s32.totalorder %s11, 0
    %p86 = por %p84, %p85
    %p87 = scmp.ne.s32.totalorder %s79, %s81
    %p88 = scmp.eq.s32.totalorder %s16, 1
    %p89 = por %p87, %p88
    %p90 = scmp.ne.s32.totalorder %s81, %s82
    %p91 = scmp.eq.s32.totalorder %s16, 0
    %p92 = por %p90, %p91
    %p93 = scmp.ne.s32.totalorder %s81, %s82
    %p94 = scmp.eq.s32.totalorder %s17, 1
    %p95 = por %p93, %p94
    %p97 = scmp.ne.s32.totalorder %s82, %s96
    %p98 = scmp.eq.s32.totalorder %s17, 0
    %p99 = por %p97, %p98
    %s100 = ssub.s32 %s11, 1
    %p101 = scmp.gt.s32.totalorder %s100, 0
    %s102 = scalar_select %p101, %s100, 0
    %s103 = ssub.s32 %s18, 1
    %p104 = scmp.gt.s32.totalorder %s103, 0
    %s105 = scalar_select %p104, %s103, 0
    %s106 = ssub.s32 %s102, %s105
    %p107 = scmp.eq.s32.totalorder %s106, 0
    %s109 = sadd.s32 %s108, 1
    %s110 = scalar_select %p107, %s108, %s109
    %p113 = pneg %p107
    %p114 = scmp.eq.s32.totalorder %s11, 1
    %p115 = por %p113, %p114
    %p116 = scmp.ne.s32.totalorder %s108, %s111
    %p117 = scmp.eq.s32.totalorder %s11, 0
    %p118 = por %p116, %p117
    %p119 = scmp.ne.s32.totalorder %s108, %s111
    %p120 = scmp.eq.s32.totalorder %s16, 1
    %p121 = por %p119, %p120
    %p122 = scmp.ne.s32.totalorder %s111, %s112
    %p123 = scmp.eq.s32.totalorder %s16, 0
    %p124 = por %p122, %p123
    %p125 = scmp.ne.s32.totalorder %s111, %s112
    %p126 = scmp.eq.s32.totalorder %s17, 1
    %p127 = por %p125, %p126
    %p129 = scmp.ne.s32.totalorder %s112, %s128
    %p130 = scmp.eq.s32.totalorder %s17, 0
    %p131 = por %p129, %p130
    %s132 = ssub.s32 %s11, 1
    %p133 = scmp.gt.s32.totalorder %s132, 0
    %s134 = scalar_select %p133, %s132, 0
    %s135 = ssub.s32 %s18, 1
    %p136 = scmp.gt.s32.totalorder %s135, 0
    %s137 = scalar_select %p136, %s135, 0
    %s138 = ssub.s32 %s134, %s137
    %p139 = scmp.eq.s32.totalorder %s138, 0
    %s141 = sadd.s32 %s140, 1
    %s142 = scalar_select %p139, %s140, %s141
    %p145 = pneg %p139
    %p146 = scmp.eq.s32.totalorder %s11, 1
    %p147 = por %p145, %p146
    %p148 = scmp.ne.s32.totalorder %s140, %s143
    %p149 = scmp.eq.s32.totalorder %s11, 0
    %p150 = por %p148, %p149
    %p151 = scmp.ne.s32.totalorder %s140, %s143
    %p152 = scmp.eq.s32.totalorder %s16, 1
    %p153 = por %p151, %p152
    %p154 = scmp.ne.s32.totalorder %s143, %s144
    %p155 = scmp.eq.s32.totalorder %s16, 0
    %p156 = por %p154, %p155
    %p157 = scmp.ne.s32.totalorder %s143, %s144
    %p158 = scmp.eq.s32.totalorder %s17, 1
    %p159 = por %p157, %p158
    %p161 = scmp.ne.s32.totalorder %s144, %s160
    %p162 = scmp.eq.s32.totalorder %s17, 0
    %p163 = por %p161, %p162
    %s164 = ssub.s32 %s11, 1
    %p165 = scmp.gt.s32.totalorder %s164, 0
    %s166 = scalar_select %p165, %s164, 0
    %s167 = ssub.s32 %s18, 1
    %p168 = scmp.gt.s32.totalorder %s167, 0
    %s169 = scalar_select %p168, %s167, 0
    %s170 = ssub.s32 %s166, %s169
    %p171 = scmp.eq.s32.totalorder %s170, 0
    %s173 = sadd.s32 %s172, 1
    %s174 = scalar_select %p171, %s172, %s173
    %p177 = pneg %p171
    %p178 = scmp.eq.s32.totalorder %s11, 1
    %p179 = por %p177, %p178
    %p180 = scmp.ne.s32.totalorder %s172, %s175
    %p181 = scmp.eq.s32.totalorder %s11, 0
    %p182 = por %p180, %p181
    %p183 = scmp.ne.s32.totalorder %s172, %s175
    %p184 = scmp.eq.s32.totalorder %s16, 1
    %p185 = por %p183, %p184
    %p186 = scmp.ne.s32.totalorder %s175, %s176
    %p187 = scmp.eq.s32.totalorder %s16, 0
    %p188 = por %p186, %p187
    %p189 = scmp.ne.s32.totalorder %s175, %s176
    %p190 = scmp.eq.s32.totalorder %s17, 1
    %p191 = por %p189, %p190
    %p193 = scmp.ne.s32.totalorder %s176, %s192
    %p194 = scmp.eq.s32.totalorder %s17, 0
    %p195 = por %p193, %p194
    %p196 = scmp.le.s32.totalorder 1, %s11
    %p197 = scmp.lt.s32.totalorder %s11, 3
    %p198 = pnand %p196, %p197
    %p199 = pneg %p198
    // Predicated region
    $region9: #{_forward_impl.1} parent=5 // pred_check
      _
    $region10: #{_forward_impl.1} parent=5 // pred_check_branch
      %201 = sbr.rel (%p198) target = $region12
    $region11: #{_forward_impl.1} parent=5 // pred_region
      %s202 = ssub.s32 %s11, 1
      // Predicated region
      $region13: #{_forward_impl.1} parent=11 // pred_check
        %p203 = pneg %p92
      $region14: #{_forward_impl.1} parent=11 // pred_check_branch
        %205 = sbr.rel (%p203) target = $region16
      $region15: #{_forward_impl.1} parent=11 // pred_region
        _
      $region16: #{_forward_impl.1} parent=11 // pred_fallthru
        _
    $region12: #{_forward_impl.1} parent=5 // pred_fallthru
      _
    %p206 = scmp.lt.s32.totalorder %s11, 2
    // Predicated region
    $region17: #{_forward_impl.1} parent=5 // pred_check
      %p207 = pneg %p206
    $region18: #{_forward_impl.1} parent=5 // pred_check_branch
      %209 = sbr.rel (%p207) target = $region20
    $region19: #{_forward_impl.1} parent=5 // pred_region
      // Predicated region
      $region21: #{_forward_impl.1} parent=19 // pred_check
        %p210 = pneg %p35
      $region22: #{_forward_impl.1} parent=19 // pred_check_branch
        %212 = sbr.rel (%p210) target = $region24
      $region23: #{_forward_impl.1} parent=19 // pred_region
        %p213 = scmp.lt.s32.totalorder %s11, 0
        %s214 = scalar_select %p213, %s11, 0
        %s215 = smul.u32 2, %s214
        %p216 = scmp.lt.s32.totalorder %s215, 1
        %s217 = scalar_select %p216, %s215, 1
        %s218 = smul.addr %s217, 4
        %s219 = scalar_lea.vmem %s0, %s218
        %p220 = scmp.lt.s32.totalorder %s11, 0
        %s221 = scalar_select %p220, %s11, 0
        %s222 = smul.u32 2, %s221
      $region24: #{_forward_impl.1} parent=19 // pred_fallthru
        _
      // Predicated region
      $region25: #{_forward_impl.1} parent=19 // pred_check
        %p223 = pneg %p65
      $region26: #{_forward_impl.1} parent=19 // pred_check_branch
        %225 = sbr.rel (%p223) target = $region28
      $region27: #{_forward_impl.1} parent=19 // pred_region
        %p226 = scmp.lt.s32.totalorder %s11, 0
        %s227 = scalar_select %p226, %s11, 0
        %s228 = smul.u32 32, %s227
        %p229 = scmp.lt.s32.totalorder %s228, 31
        %s230 = scalar_select %p229, %s228, 31
        %s231 = smul.addr %s230, 4
        %s232 = smul.addr %s231, 4
        %s233 = scalar_lea.vmem %s1, %s232
        %p234 = scmp.lt.s32.totalorder %s11, 0
        %s235 = scalar_select %p234, %s11, 0
        %s236 = smul.u32 32, %s235
      $region28: #{_forward_impl.1} parent=19 // pred_fallthru
        _
      // Predicated region
      $region29: #{_forward_impl.1} parent=19 // pred_check
        %p237 = pneg %p118
      $region30: #{_forward_impl.1} parent=19 // pred_check_branch
        %239 = sbr.rel (%p237) target = $region32
      $region31: #{_forward_impl.1} parent=19 // pred_region
        %s240 = ssub.s32 %s11, 1
        %p241 = scmp.gt.s32.totalorder %s240, 0
        %s242 = scalar_select %p241, %s240, 0
        %s243 = smul.u32 2, %s242
        %p244 = scmp.lt.s32.totalorder %s243, 1
        %s245 = scalar_select %p244, %s243, 1
        %s246 = smul.addr %s245, 4
        %s247 = scalar_lea.vmem %s3, %s246
        %s248 = ssub.s32 %s11, 1
        %p249 = scmp.gt.s32.totalorder %s248, 0
        %s250 = scalar_select %p249, %s248, 0
        %s251 = smul.u32 2, %s250
      $region32: #{_forward_impl.1} parent=19 // pred_fallthru
        _
      // Predicated region
      $region33: #{_forward_impl.1} parent=19 // pred_check
        %p252 = pneg %p150
      $region34: #{_forward_impl.1} parent=19 // pred_check_branch
        %254 = sbr.rel (%p252) target = $region36
      $region35: #{_forward_impl.1} parent=19 // pred_region
        %s255 = ssub.s32 %s11, 1
        %p256 = scmp.gt.s32.totalorder %s255, 0
        %s257 = scalar_select %p256, %s255, 0
        %s258 = smul.u32 2, %s257
        %p259 = scmp.lt.s32.totalorder %s258, 1
        %s260 = scalar_select %p259, %s258, 1
        %s261 = scalar_lea.vmem %s4, %s260
        %s262 = ssub.s32 %s11, 1
        %p263 = scmp.gt.s32.totalorder %s262, 0
        %s264 = scalar_select %p263, %s262, 0
        %s265 = smul.u32 2, %s264
      $region36: #{_forward_impl.1} parent=19 // pred_fallthru
        _
    $region20: #{_forward_impl.1} parent=5 // pred_fallthru
      _
    %p266 = scmp.le.s32.totalorder 1, %s11
    %p267 = scmp.lt.s32.totalorder %s11, 3
    %p268 = pnand %p266, %p267
    %p269 = pneg %p268
    // Predicated region
    $region37: #{_forward_impl.1} parent=5 // pred_check
      _
    $region38: #{_forward_impl.1} parent=5 // pred_check_branch
      %271 = sbr.rel (%p268) target = $region40
    $region39: #{_forward_impl.1} parent=5 // pred_region
      %s272 = ssub.s32 %s11, 1
      %p273 = scmp.lt.s32.totalorder %s16, 0
      %s274 = scalar_select %p273, %s16, 0
      %s275 = smul.u32 2, %s274
      %p276 = scmp.lt.s32.totalorder %s275, 1
      %s277 = scalar_select %p276, %s275, 1
      %s278 = smul.addr %s277, 4
      %s279 = scalar_lea.vmem %s0, %s278
      %p280 = pneg %p41
      %p281 = pneg %p38
      %p282 = scmp.lt.s32.totalorder %s16, 0
      %s283 = scalar_select %p282, %s16, 0
      %s284 = smul.u32 32, %s283
      %p285 = scmp.lt.s32.totalorder %s284, 31
      %s286 = scalar_select %p285, %s284, 31
      %s287 = smul.addr %s286, 4
      %s288 = smul.addr %s287, 4
      %s289 = scalar_lea.vmem %s1, %s288
      %p290 = pneg %p71
      %p291 = pneg %p68
      %p292 = pneg %p92
      %p293 = pneg %p89
      %s294 = ssub.s32 %s16, 1
      %p295 = scmp.gt.s32.totalorder %s294, 0
      %s296 = scalar_select %p295, %s294, 0
      %s297 = smul.u32 2, %s296
      %p298 = scmp.lt.s32.totalorder %s297, 1
      %s299 = scalar_select %p298, %s297, 1
      %s300 = smul.addr %s299, 4
      %s301 = scalar_lea.vmem %s3, %s300
      %p302 = pneg %p124
      %p303 = pneg %p121
      %s304 = ssub.s32 %s16, 1
      %p305 = scmp.gt.s32.totalorder %s304, 0
      %s306 = scalar_select %p305, %s304, 0
      %s307 = smul.u32 2, %s306
      %p308 = scmp.lt.s32.totalorder %s307, 1
      %s309 = scalar_select %p308, %s307, 1
      %s310 = scalar_lea.vmem %s4, %s309
      %p311 = pneg %p156
      %p312 = pneg %p153
      %p313 = pneg %p188
      %p314 = pneg %p185
      %s315 = ssub.s32 %s16, 1
      %p316 = scmp.gt.s32.totalorder %s315, 0
      %s317 = scalar_select %p316, %s315, 0
      %s318 = smul.u32 2, %s317
      %p319 = scmp.lt.s32.totalorder %s318, 1
      %s320 = scalar_select %p319, %s318, 1
      %s321 = smul.addr %s320, 8
      %s322 = scalar_lea.vmem %s5, %s321
      %p323 = scmp.lt.s32.totalorder %s16, 0
      %s324 = scalar_select %p323, %s16, 0
      %s325 = smul.u32 2, %s324
      %p326 = scmp.lt.s32.totalorder %s325, 1
      %s327 = scalar_select %p326, %s325, 1
      %s328 = smul.addr %s327, 4
      %s329 = scalar_lea.vmem %s0, %s328
      %p330 = scmp.lt.s32.totalorder %s16, 0
      %s331 = scalar_select %p330, %s16, 0
      %s332 = smul.u32 2, %s331
      %p333 = scmp.lt.s32.totalorder %s16, 0
      %s334 = scalar_select %p333, %s16, 0
      %s335 = smul.u32 32, %s334
      %p336 = scmp.lt.s32.totalorder %s335, 31
      %s337 = scalar_select %p336, %s335, 31
      %s338 = smul.addr %s337, 4
      %s339 = smul.addr %s338, 4
      %s340 = scalar_lea.vmem %s1, %s339
      %p341 = scmp.lt.s32.totalorder %s16, 0
      %s342 = scalar_select %p341, %s16, 0
      %s343 = smul.u32 32, %s342
      %s344 = ssub.s32 %s16, 1
      %p345 = scmp.gt.s32.totalorder %s344, 0
      %s346 = scalar_select %p345, %s344, 0
      %s347 = smul.u32 2, %s346
      %p348 = scmp.lt.s32.totalorder %s347, 1
      %s349 = scalar_select %p348, %s347, 1
      %s350 = smul.addr %s349, 4
      %s351 = scalar_lea.vmem %s3, %s350
      %s352 = ssub.s32 %s16, 1
      %p353 = scmp.gt.s32.totalorder %s352, 0
      %s354 = scalar_select %p353, %s352, 0
      %s355 = smul.u32 2, %s354
      %s356 = ssub.s32 %s16, 1
      %p357 = scmp.gt.s32.totalorder %s356, 0
      %s358 = scalar_select %p357, %s356, 0
      %s359 = smul.u32 2, %s358
      %p360 = scmp.lt.s32.totalorder %s359, 1
      %s361 = scalar_select %p360, %s359, 1
      %s362 = scalar_lea.vmem %s4, %s361
      %s363 = ssub.s32 %s16, 1
      %p364 = scmp.gt.s32.totalorder %s363, 0
      %s365 = scalar_select %p364, %s363, 0
      %s366 = smul.u32 2, %s365
      %s367 = ssub.s32 %s16, 1
      %p368 = scmp.gt.s32.totalorder %s367, 0
      %s369 = scalar_select %p368, %s367, 0
      %s370 = smul.u32 2, %s369
      %p371 = scmp.lt.s32.totalorder %s370, 1
      %s372 = scalar_select %p371, %s370, 1
      %s373 = smul.addr %s372, 8
      %s374 = scalar_lea.vmem %s5, %s373
      %s375 = ssub.s32 %s16, 1
      %p376 = scmp.gt.s32.totalorder %s375, 0
      %s377 = scalar_select %p376, %s375, 0
      %s378 = smul.u32 2, %s377
      %p380 = scmp.eq.s32.totalorder %s16, 0
      // Predicated region
      $region41: #{_forward_impl.1} parent=39 // pred_check
        %p381 = pneg %p380
      $region42: #{_forward_impl.1} parent=39 // pred_check_branch
        %383 = sbr.rel (%p381) target = $region44
      $region43: #{_forward_impl.1} parent=39 // pred_region
        %384 = vst [vmem:[#allocation2] sm:$0xff] 0.0
        %385 = vst [vmem:[#allocation2 + $0x8] sm:$0xff] 0.0
        %386 = vst [vmem:[#allocation2 + $0x10] sm:$0xff] 0.0
        %vm387 = vcmask 130048
        %388 = vst.msk [vmem:[#allocation2 + $0x18] sm:$0xff] %vm387, 0.0
        %389 = vst [vmem:[#allocation2 + $0x20] sm:$0xff] 0.0
        %390 = vst [vmem:[#allocation2 + $0x28] sm:$0xff] 0.0
        %391 = vst [vmem:[#allocation2 + $0x30] sm:$0xff] 0.0
        %392 = vst.msk [vmem:[#allocation2 + $0x38] sm:$0xff] %vm387, 0.0
      $region44: #{_forward_impl.1} parent=39 // pred_fallthru
        _
      %p393 = scmp.lt.s32.totalorder %s16, 1
      // Predicated region
      $region45: #{_forward_impl.1} parent=39 // pred_check
        %p394 = pneg %p393
      $region46: #{_forward_impl.1} parent=39 // pred_check_branch
        %396 = sbr.rel (%p394) target = $region48
      $region47: #{_forward_impl.1} parent=39 // pred_region
        %v397 = vld [vmem:[#allocation2] sm:$0xff]
        %v398 = vld [vmem:[#allocation2 + $0x8] sm:$0xff]
        %v399 = vld [vmem:[#allocation2 + $0x10] sm:$0xff]
        %v400 = vld [vmem:[#allocation2 + $0x18] sm:$0xff]
        %v401 = vld [vmem:[#allocation2 + $0x20] sm:$0xff]
        %v402 = vld [vmem:[#allocation2 + $0x28] sm:$0xff]
        %v403 = vld [vmem:[#allocation2 + $0x30] sm:$0xff]
        %v404 = vld [vmem:[#allocation2 + $0x38] sm:$0xff]
        %v405 = vld [vmem:[%s329] sm:$0xff]
        %v406 = vld [vmem:[%s329 + $0x8] sm:$0xff]
        %v407 = vld [vmem:[%s340] sm:$0xff]
        %v408 = vld [vmem:[%s340 + $0x8] sm:$0xff]
        %v409 = vld [vmem:[%s340 + $0x10] sm:$0xff]
        %v410 = vld [vmem:[%s340 + $0x18] sm:$0xff]
        %v411 = vld [vmem:[%s340 + $0x20] sm:$0xff]
        %v412 = vld [vmem:[%s340 + $0x28] sm:$0xff]
        %v413 = vld [vmem:[%s340 + $0x30] sm:$0xff]
        %v414 = vld [vmem:[%s340 + $0x38] sm:$0xff]
        %v415 = vld [vmem:[%s340 + $0x40] sm:$0xff]
        %v416 = vld [vmem:[%s340 + $0x48] sm:$0xff]
        %v417 = vld [vmem:[%s340 + $0x50] sm:$0xff]
        %v418 = vld [vmem:[%s340 + $0x58] sm:$0xff]
        %v419 = vld [vmem:[%s340 + $0x60] sm:$0xff]
        %v420 = vld [vmem:[%s340 + $0x68] sm:$0xff]
        %v421 = vld [vmem:[%s340 + $0x70] sm:$0xff]
        %v422 = vld [vmem:[%s340 + $0x78] sm:$0xff]
        %v423 = vld [vmem:[%s340 + $0x80] sm:$0xff]
        %v424 = vld [vmem:[%s340 + $0x88] sm:$0xff]
        %v425 = vld [vmem:[%s340 + $0x90] sm:$0xff]
        %v426 = vld [vmem:[%s340 + $0x98] sm:$0xff]
        %v427 = vld [vmem:[%s340 + $0xa0] sm:$0xff]
        %v428 = vld [vmem:[%s340 + $0xa8] sm:$0xff]
        %v429 = vld [vmem:[%s340 + $0xb0] sm:$0xff]
        %v430 = vld [vmem:[%s340 + $0xb8] sm:$0xff]
        %v431 = vld [vmem:[%s340 + $0xc0] sm:$0xff]
        %v432 = vld [vmem:[%s340 + $0xc8] sm:$0xff]
        %v433 = vld [vmem:[%s340 + $0xd0] sm:$0xff]
        %v434 = vld [vmem:[%s340 + $0xd8] sm:$0xff]
        %v435 = vld [vmem:[%s340 + $0xe0] sm:$0xff]
        %v436 = vld [vmem:[%s340 + $0xe8] sm:$0xff]
        %v437 = vld [vmem:[%s340 + $0xf0] sm:$0xff]
        %v438 = vld [vmem:[%s340 + $0xf8] sm:$0xff]
        %v439 = vld [vmem:[%s340 + $0x100] sm:$0xff]
        %v440 = vld [vmem:[%s340 + $0x108] sm:$0xff]
        %v441 = vld [vmem:[%s340 + $0x110] sm:$0xff]
        %v442 = vld [vmem:[%s340 + $0x118] sm:$0xff]
        %v443 = vld [vmem:[%s340 + $0x120] sm:$0xff]
        %v444 = vld [vmem:[%s340 + $0x128] sm:$0xff]
        %v445 = vld [vmem:[%s340 + $0x130] sm:$0xff]
        %v446 = vld [vmem:[%s340 + $0x138] sm:$0xff]
        %v447 = vld [vmem:[%s340 + $0x140] sm:$0xff]
        %v448 = vld [vmem:[%s340 + $0x148] sm:$0xff]
        %v449 = vld [vmem:[%s340 + $0x150] sm:$0xff]
        %v450 = vld [vmem:[%s340 + $0x158] sm:$0xff]
        %v451 = vld [vmem:[%s340 + $0x160] sm:$0xff]
        %v452 = vld [vmem:[%s340 + $0x168] sm:$0xff]
        %v453 = vld [vmem:[%s340 + $0x170] sm:$0xff]
        %v454 = vld [vmem:[%s340 + $0x178] sm:$0xff]
        %v455 = vld [vmem:[%s340 + $0x180] sm:$0xff]
        %v456 = vld [vmem:[%s340 + $0x188] sm:$0xff]
        %v457 = vld [vmem:[%s340 + $0x190] sm:$0xff]
        %v458 = vld [vmem:[%s340 + $0x198] sm:$0xff]
        %v459 = vld [vmem:[%s340 + $0x1a0] sm:$0xff]
        %v460 = vld [vmem:[%s340 + $0x1a8] sm:$0xff]
        %v461 = vld [vmem:[%s340 + $0x1b0] sm:$0xff]
        %v462 = vld [vmem:[%s340 + $0x1b8] sm:$0xff]
        %v463 = vld [vmem:[%s340 + $0x1c0] sm:$0xff]
        %v464 = vld [vmem:[%s340 + $0x1c8] sm:$0xff]
        %v465 = vld [vmem:[%s340 + $0x1d0] sm:$0xff]
        %v466 = vld [vmem:[%s340 + $0x1d8] sm:$0xff]
        %v467 = vld [vmem:[%s340 + $0x1e0] sm:$0xff]
        %v468 = vld [vmem:[%s340 + $0x1e8] sm:$0xff]
        %v469 = vld [vmem:[%s340 + $0x1f0] sm:$0xff]
        %v470 = vld [vmem:[%s340 + $0x1f8] sm:$0xff]
        %v473 = vunpack.c.l.b16 %v405
        %v474 = vunpack.c.h.b16 %v405
        %v475 = vunpack.c.l.b16 %v406
        %v476 = vunpack.c.h.b16 %v406
        %v477 = vpack.c.b16 %v475, %v473
        %v478 = vpack.c.b16 %v476, %v474
        %v545 = vunpack.c.l.b16 %v407
        %v546 = vunpack.c.h.b16 %v407
        %v547 = vunpack.c.l.b16 %v408
        %v548 = vunpack.c.h.b16 %v408
        %v549 = vunpack.c.l.b16 %v409
        %v550 = vunpack.c.h.b16 %v409
        %v551 = vunpack.c.l.b16 %v410
        %v552 = vunpack.c.h.b16 %v410
        %v553 = vunpack.c.l.b16 %v411
        %v554 = vunpack.c.h.b16 %v411
        %v555 = vunpack.c.l.b16 %v412
        %v556 = vunpack.c.h.b16 %v412
        %v557 = vunpack.c.l.b16 %v413
        %v558 = vunpack.c.h.b16 %v413
        %v559 = vunpack.c.l.b16 %v414
        %v560 = vunpack.c.h.b16 %v414
        %v561 = vunpack.c.l.b16 %v415
        %v562 = vunpack.c.h.b16 %v415
        %v563 = vunpack.c.l.b16 %v416
        %v564 = vunpack.c.h.b16 %v416
        %v565 = vunpack.c.l.b16 %v417
        %v566 = vunpack.c.h.b16 %v417
        %v567 = vunpack.c.l.b16 %v418
        %v568 = vunpack.c.h.b16 %v418
        %v569 = vunpack.c.l.b16 %v419
        %v570 = vunpack.c.h.b16 %v419
        %v571 = vunpack.c.l.b16 %v420
        %v572 = vunpack.c.h.b16 %v420
        %v573 = vunpack.c.l.b16 %v421
        %v574 = vunpack.c.h.b16 %v421
        %v575 = vunpack.c.l.b16 %v422
        %v576 = vunpack.c.h.b16 %v422
        %v577 = vunpack.c.l.b16 %v423
        %v578 = vunpack.c.h.b16 %v423
        %v579 = vunpack.c.l.b16 %v424
        %v580 = vunpack.c.h.b16 %v424
        %v581 = vunpack.c.l.b16 %v425
        %v582 = vunpack.c.h.b16 %v425
        %v583 = vunpack.c.l.b16 %v426
        %v584 = vunpack.c.h.b16 %v426
        %v585 = vunpack.c.l.b16 %v427
        %v586 = vunpack.c.h.b16 %v427
        %v587 = vunpack.c.l.b16 %v428
        %v588 = vunpack.c.h.b16 %v428
        %v589 = vunpack.c.l.b16 %v429
        %v590 = vunpack.c.h.b16 %v429
        %v591 = vunpack.c.l.b16 %v430
        %v592 = vunpack.c.h.b16 %v430
        %v593 = vunpack.c.l.b16 %v431
        %v594 = vunpack.c.h.b16 %v431
        %v595 = vunpack.c.l.b16 %v432
        %v596 = vunpack.c.h.b16 %v432
        %v597 = vunpack.c.l.b16 %v433
        %v598 = vunpack.c.h.b16 %v433
        %v599 = vunpack.c.l.b16 %v434
        %v600 = vunpack.c.h.b16 %v434
        %v601 = vunpack.c.l.b16 %v435
        %v602 = vunpack.c.h.b16 %v435
        %v603 = vunpack.c.l.b16 %v436
        %v604 = vunpack.c.h.b16 %v436
        %v605 = vunpack.c.l.b16 %v437
        %v606 = vunpack.c.h.b16 %v437
        %v607 = vunpack.c.l.b16 %v438
        %v608 = vunpack.c.h.b16 %v438
        %v609 = vunpack.c.l.b16 %v439
        %v610 = vunpack.c.h.b16 %v439
        %v611 = vunpack.c.l.b16 %v440
        %v612 = vunpack.c.h.b16 %v440
        %v613 = vunpack.c.l.b16 %v441
        %v614 = vunpack.c.h.b16 %v441
        %v615 = vunpack.c.l.b16 %v442
        %v616 = vunpack.c.h.b16 %v442
        %v617 = vunpack.c.l.b16 %v443
        %v618 = vunpack.c.h.b16 %v443
        %v619 = vunpack.c.l.b16 %v444
        %v620 = vunpack.c.h.b16 %v444
        %v621 = vunpack.c.l.b16 %v445
        %v622 = vunpack.c.h.b16 %v445
        %v623 = vunpack.c.l.b16 %v446
        %v624 = vunpack.c.h.b16 %v446
        %v625 = vunpack.c.l.b16 %v447
        %v626 = vunpack.c.h.b16 %v447
        %v627 = vunpack.c.l.b16 %v448
        %v628 = vunpack.c.h.b16 %v448
        %v629 = vunpack.c.l.b16 %v449
        %v630 = vunpack.c.h.b16 %v449
        %v631 = vunpack.c.l.b16 %v450
        %v632 = vunpack.c.h.b16 %v450
        %v633 = vunpack.c.l.b16 %v451
        %v634 = vunpack.c.h.b16 %v451
        %v635 = vunpack.c.l.b16 %v452
        %v636 = vunpack.c.h.b16 %v452
        %v637 = vunpack.c.l.b16 %v453
        %v638 = vunpack.c.h.b16 %v453
        %v639 = vunpack.c.l.b16 %v454
        %v640 = vunpack.c.h.b16 %v454
        %v641 = vunpack.c.l.b16 %v455
        %v642 = vunpack.c.h.b16 %v455
        %v643 = vunpack.c.l.b16 %v456
        %v644 = vunpack.c.h.b16 %v456
        %v645 = vunpack.c.l.b16 %v457
        %v646 = vunpack.c.h.b16 %v457
        %v647 = vunpack.c.l.b16 %v458
        %v648 = vunpack.c.h.b16 %v458
        %v649 = vunpack.c.l.b16 %v459
        %v650 = vunpack.c.h.b16 %v459
        %v651 = vunpack.c.l.b16 %v460
        %v652 = vunpack.c.h.b16 %v460
        %v653 = vunpack.c.l.b16 %v461
        %v654 = vunpack.c.h.b16 %v461
        %v655 = vunpack.c.l.b16 %v462
        %v656 = vunpack.c.h.b16 %v462
        %v657 = vunpack.c.l.b16 %v463
        %v658 = vunpack.c.h.b16 %v463
        %v659 = vunpack.c.l.b16 %v464
        %v660 = vunpack.c.h.b16 %v464
        %v661 = vunpack.c.l.b16 %v465
        %v662 = vunpack.c.h.b16 %v465
        %v663 = vunpack.c.l.b16 %v466
        %v664 = vunpack.c.h.b16 %v466
        %v665 = vunpack.c.l.b16 %v467
        %v666 = vunpack.c.h.b16 %v467
        %v667 = vunpack.c.l.b16 %v468
        %v668 = vunpack.c.h.b16 %v468
        %v669 = vunpack.c.l.b16 %v469
        %v670 = vunpack.c.h.b16 %v469
        %v671 = vunpack.c.l.b16 %v470
        %v672 = vunpack.c.h.b16 %v470
        %v673 = vpack.c.b16 %v549, %v545
        %v674 = vpack.c.b16 %v550, %v546
        %v675 = vpack.c.b16 %v551, %v547
        %v676 = vpack.c.b16 %v552, %v548
        %v677 = vpack.c.b16 %v557, %v553
        %v678 = vpack.c.b16 %v558, %v554
        %v679 = vpack.c.b16 %v559, %v555
        %v680 = vpack.c.b16 %v560, %v556
        %v681 = vpack.c.b16 %v565, %v561
        %v682 = vpack.c.b16 %v566, %v562
        %v683 = vpack.c.b16 %v567, %v563
        %v684 = vpack.c.b16 %v568, %v564
        %v685 = vpack.c.b16 %v573, %v569
        %v686 = vpack.c.b16 %v574, %v570
        %v687 = vpack.c.b16 %v575, %v571
        %v688 = vpack.c.b16 %v576, %v572
        %v689 = vpack.c.b16 %v581, %v577
        %v690 = vpack.c.b16 %v582, %v578
        %v691 = vpack.c.b16 %v583, %v579
        %v692 = vpack.c.b16 %v584, %v580
        %v693 = vpack.c.b16 %v589, %v585
        %v694 = vpack.c.b16 %v590, %v586
        %v695 = vpack.c.b16 %v591, %v587
        %v696 = vpack.c.b16 %v592, %v588
        %v697 = vpack.c.b16 %v597, %v593
        %v698 = vpack.c.b16 %v598, %v594
        %v699 = vpack.c.b16 %v599, %v595
        %v700 = vpack.c.b16 %v600, %v596
        %v701 = vpack.c.b16 %v605, %v601
        %v702 = vpack.c.b16 %v606, %v602
        %v703 = vpack.c.b16 %v607, %v603
        %v704 = vpack.c.b16 %v608, %v604
        %v705 = vpack.c.b16 %v613, %v609
        %v706 = vpack.c.b16 %v614, %v610
        %v707 = vpack.c.b16 %v615, %v611
        %v708 = vpack.c.b16 %v616, %v612
        %v709 = vpack.c.b16 %v621, %v617
        %v710 = vpack.c.b16 %v622, %v618
        %v711 = vpack.c.b16 %v623, %v619
        %v712 = vpack.c.b16 %v624, %v620
        %v713 = vpack.c.b16 %v629, %v625
        %v714 = vpack.c.b16 %v630, %v626
        %v715 = vpack.c.b16 %v631, %v627
        %v716 = vpack.c.b16 %v632, %v628
        %v717 = vpack.c.b16 %v637, %v633
        %v718 = vpack.c.b16 %v638, %v634
        %v719 = vpack.c.b16 %v639, %v635
        %v720 = vpack.c.b16 %v640, %v636
        %v721 = vpack.c.b16 %v645, %v641
        %v722 = vpack.c.b16 %v646, %v642
        %v723 = vpack.c.b16 %v647, %v643
        %v724 = vpack.c.b16 %v648, %v644
        %v725 = vpack.c.b16 %v653, %v649
        %v726 = vpack.c.b16 %v654, %v650
        %v727 = vpack.c.b16 %v655, %v651
        %v728 = vpack.c.b16 %v656, %v652
        %v729 = vpack.c.b16 %v661, %v657
        %v730 = vpack.c.b16 %v662, %v658
        %v731 = vpack.c.b16 %v663, %v659
        %v732 = vpack.c.b16 %v664, %v660
        %v733 = vpack.c.b16 %v669, %v665
        %v734 = vpack.c.b16 %v670, %v666
        %v735 = vpack.c.b16 %v671, %v667
        %v736 = vpack.c.b16 %v672, %v668
        %801 = vmatpush.bf16.msra.mxu0 %v701
        %802 = vmatpush.bf16.msra.mxu0 %v697
        %803 = vmatpush.bf16.msra.mxu0 %v693
        %804 = vmatpush.bf16.msra.mxu0 %v689
        %805 = vmatpush.bf16.msra.mxu0 %v685
        %806 = vmatpush.bf16.msra.mxu0 %v681
        %807 = vmatpush.bf16.msra.mxu0 %v677
        %808 = vmatpush.bf16.msra.mxu0 %v673
        %809 = vmatmul.bf16.gmra.mxu0 %v477
        %v810 = vpop.f32.mrf.mxu0
        %v811 = vadd.f32 0.0, %v810
        %v812 = vpop.f32.mrf.mxu0
        %v813 = vadd.f32 0.0, %v812
        %814 = vdwg.mxu0
        %815 = vmatpush.bf16.msra.mxu0 %v733
        %816 = vmatpush.bf16.msra.mxu0 %v729
        %817 = vmatpush.bf16.msra.mxu0 %v725
        %818 = vmatpush.bf16.msra.mxu0 %v721
        %819 = vmatpush.bf16.msra.mxu0 %v717
        %820 = vmatpush.bf16.msra.mxu0 %v713
        %821 = vmatpush.bf16.msra.mxu0 %v709
        %822 = vmatpush.bf16.msra.mxu0 %v705
        %823 = vmatmul.bf16.gmra.mxu0 %v478
        %v824 = vpop.f32.mrf.mxu0
        %v825 = vadd.f32 %v811, %v824
        %v826 = vpop.f32.mrf.mxu0
        %v827 = vadd.f32 %v813, %v826
        %828 = vdwg.mxu0
        %829 = vmatpush.bf16.msra.mxu0 %v702
        %830 = vmatpush.bf16.msra.mxu0 %v698
        %831 = vmatpush.bf16.msra.mxu0 %v694
        %832 = vmatpush.bf16.msra.mxu0 %v690
        %833 = vmatpush.bf16.msra.mxu0 %v686
        %834 = vmatpush.bf16.msra.mxu0 %v682
        %835 = vmatpush.bf16.msra.mxu0 %v678
        %836 = vmatpush.bf16.msra.mxu0 %v674
        %837 = vmatmul.bf16.gmra.mxu0 %v477
        %v838 = vpop.f32.mrf.mxu0
        %v839 = vadd.f32 0.0, %v838
        %v840 = vpop.f32.mrf.mxu0
        %v841 = vadd.f32 0.0, %v840
        %842 = vdwg.mxu0
        %843 = vmatpush.bf16.msra.mxu0 %v734
        %844 = vmatpush.bf16.msra.mxu0 %v730
        %845 = vmatpush.bf16.msra.mxu0 %v726
        %846 = vmatpush.bf16.msra.mxu0 %v722
        %847 = vmatpush.bf16.msra.mxu0 %v718
        %848 = vmatpush.bf16.msra.mxu0 %v714
        %849 = vmatpush.bf16.msra.mxu0 %v710
        %850 = vmatpush.bf16.msra.mxu0 %v706
        %851 = vmatmul.bf16.gmra.mxu0 %v478
        %v852 = vpop.f32.mrf.mxu0
        %v853 = vadd.f32 %v839, %v852
        %v854 = vpop.f32.mrf.mxu0
        %v855 = vadd.f32 %v841, %v854
        %856 = vdwg.mxu0
        %857 = vmatpush.bf16.msra.mxu0 %v703
        %858 = vmatpush.bf16.msra.mxu0 %v699
        %859 = vmatpush.bf16.msra.mxu0 %v695
        %860 = vmatpush.bf16.msra.mxu0 %v691
        %861 = vmatpush.bf16.msra.mxu0 %v687
        %862 = vmatpush.bf16.msra.mxu0 %v683
        %863 = vmatpush.bf16.msra.mxu0 %v679
        %864 = vmatpush.bf16.msra.mxu0 %v675
        %865 = vmatmul.bf16.gmra.mxu0 %v477
        %v866 = vpop.f32.mrf.mxu0
        %v867 = vadd.f32 0.0, %v866
        %v868 = vpop.f32.mrf.mxu0
        %v869 = vadd.f32 0.0, %v868
        %870 = vdwg.mxu0
        %871 = vmatpush.bf16.msra.mxu0 %v735
        %872 = vmatpush.bf16.msra.mxu0 %v731
        %873 = vmatpush.bf16.msra.mxu0 %v727
        %874 = vmatpush.bf16.msra.mxu0 %v723
        %875 = vmatpush.bf16.msra.mxu0 %v719
        %876 = vmatpush.bf16.msra.mxu0 %v715
        %877 = vmatpush.bf16.msra.mxu0 %v711
        %878 = vmatpush.bf16.msra.mxu0 %v707
        %879 = vmatmul.bf16.gmra.mxu0 %v478
        %v880 = vpop.f32.mrf.mxu0
        %v881 = vadd.f32 %v867, %v880
        %v882 = vpop.f32.mrf.mxu0
        %v883 = vadd.f32 %v869, %v882
        %884 = vdwg.mxu0
        %885 = vmatpush.bf16.msra.mxu0 %v704
        %886 = vmatpush.bf16.msra.mxu0 %v700
        %887 = vmatpush.bf16.msra.mxu0 %v696
        %888 = vmatpush.bf16.msra.mxu0 %v692
        %889 = vmatpush.bf16.msra.mxu0 %v688
        %890 = vmatpush.bf16.msra.mxu0 %v684
        %891 = vmatpush.bf16.msra.mxu0 %v680
        %892 = vmatpush.bf16.msra.mxu0 %v676
        %893 = vmatmul.bf16.gmra.mxu0 %v477
        %v894 = vpop.f32.mrf.mxu0
        %v895 = vadd.f32 0.0, %v894
        %v896 = vpop.f32.mrf.mxu0
        %v897 = vadd.f32 0.0, %v896
        %898 = vdwg.mxu0
        %899 = vmatpush.bf16.msra.mxu0 %v736
        %900 = vmatpush.bf16.msra.mxu0 %v732
        %901 = vmatpush.bf16.msra.mxu0 %v728
        %902 = vmatpush.bf16.msra.mxu0 %v724
        %903 = vmatpush.bf16.msra.mxu0 %v720
        %904 = vmatpush.bf16.msra.mxu0 %v716
        %905 = vmatpush.bf16.msra.mxu0 %v712
        %906 = vmatpush.bf16.msra.mxu0 %v708
        %907 = vmatmul.bf16.gmra.mxu0 %v478
        %v908 = vpop.f32.mrf.mxu0
        %v909 = vadd.f32 %v895, %v908
        %v910 = vpop.f32.mrf.mxu0
        %v911 = vadd.f32 %v897, %v910
        %912 = vdwg.mxu0
        %v913 = vadd.f32 %v397, %v825
        %v914 = vadd.f32 %v398, %v853
        %v915 = vadd.f32 %v399, %v881
        %v916 = vadd.f32 %v400, %v909
        %v917 = vadd.f32 %v401, %v827
        %v918 = vadd.f32 %v402, %v855
        %v919 = vadd.f32 %v403, %v883
        %v920 = vadd.f32 %v404, %v911
        %921 = vst [vmem:[#allocation2] sm:$0xff] %v913
        %922 = vst [vmem:[#allocation2 + $0x8] sm:$0xff] %v914
        %923 = vst [vmem:[#allocation2 + $0x10] sm:$0xff] %v915
        %vm924 = vcmask 130048
        %925 = vst.msk [vmem:[#allocation2 + $0x18] sm:$0xff] %vm924, %v916
        %926 = vst [vmem:[#allocation2 + $0x20] sm:$0xff] %v917
        %927 = vst [vmem:[#allocation2 + $0x28] sm:$0xff] %v918
        %928 = vst [vmem:[#allocation2 + $0x30] sm:$0xff] %v919
        %929 = vst.msk [vmem:[#allocation2 + $0x38] sm:$0xff] %vm924, %v920
      $region48: #{_forward_impl.1} parent=39 // pred_fallthru
        _
      // Predicated region
      $region49: #{_forward_impl.1} parent=39 // pred_check
        %p930 = pneg %p380
      $region50: #{_forward_impl.1} parent=39 // pred_check_branch
        %932 = sbr.rel (%p930) target = $region52
      $region51: #{_forward_impl.1} parent=39 // pred_region
        %v933 = vld [vmem:[#allocation2] sm:$0xff]
        %v934 = vld [vmem:[#allocation2 + $0x8] sm:$0xff]
        %v935 = vld [vmem:[#allocation2 + $0x10] sm:$0xff]
        %v936 = vld [vmem:[#allocation2 + $0x18] sm:$0xff]
        %v937 = vld [vmem:[#allocation2 + $0x20] sm:$0xff]
        %v938 = vld [vmem:[#allocation2 + $0x28] sm:$0xff]
        %v939 = vld [vmem:[#allocation2 + $0x30] sm:$0xff]
        %v940 = vld [vmem:[#allocation2 + $0x38] sm:$0xff]
        %v941 = vld [vmem:[%s2] sm:$0xf]
        %v943 = vperm.slane %v941, 0
        %v944 = vperm.slane %v941, 1
        %v945 = vperm.slane %v941, 2
        %v946 = vperm.slane %v941, 3
        %v951 = vadd.f32 %v933, %v943
        %v952 = vadd.f32 %v934, %v944
        %v953 = vadd.f32 %v935, %v945
        %v954 = vadd.f32 %v936, %v946
        %v955 = vadd.f32 %v937, %v943
        %v956 = vadd.f32 %v938, %v944
        %v957 = vadd.f32 %v939, %v945
        %v958 = vadd.f32 %v940, %v946
        %v959 = vmax.f32 %v951, 0.0
        %v960 = vmax.f32 %v952, 0.0
        %v961 = vmax.f32 %v953, 0.0
        %v962 = vmax.f32 %v954, 0.0
        %v963 = vmax.f32 %v955, 0.0
        %v964 = vmax.f32 %v956, 0.0
        %v965 = vmax.f32 %v957, 0.0
        %v966 = vmax.f32 %v958, 0.0
        %967 = vst [vmem:[#allocation2] sm:$0xff] %v959
        %968 = vst [vmem:[#allocation2 + $0x8] sm:$0xff] %v960
        %969 = vst [vmem:[#allocation2 + $0x10] sm:$0xff] %v961
        %vm970 = vcmask 130048
        %971 = vst.msk [vmem:[#allocation2 + $0x18] sm:$0xff] %vm970, %v962
        %972 = vst [vmem:[#allocation2 + $0x20] sm:$0xff] %v963
        %973 = vst [vmem:[#allocation2 + $0x28] sm:$0xff] %v964
        %974 = vst [vmem:[#allocation2 + $0x30] sm:$0xff] %v965
        %975 = vst.msk [vmem:[#allocation2 + $0x38] sm:$0xff] %vm970, %v966
      $region52: #{_forward_impl.1} parent=39 // pred_fallthru
        _
      %p976 = scmp.ge.s32.totalorder %s16, 1
      // Predicated region
      $region53: #{_forward_impl.1} parent=39 // pred_check
        %p977 = pneg %p976
      $region54: #{_forward_impl.1} parent=39 // pred_check_branch
        %979 = sbr.rel (%p977) target = $region56
      $region55: #{_forward_impl.1} parent=39 // pred_region
        %v980 = vld [vmem:[#allocation2] sm:$0xff]
        %v981 = vld [vmem:[#allocation2 + $0x8] sm:$0xff]
        %v982 = vld [vmem:[#allocation2 + $0x10] sm:$0xff]
        %v983 = vld [vmem:[#allocation2 + $0x18] sm:$0xff]
        %v984 = vld [vmem:[#allocation2 + $0x20] sm:$0xff]
        %v985 = vld [vmem:[#allocation2 + $0x28] sm:$0xff]
        %v986 = vld [vmem:[#allocation2 + $0x30] sm:$0xff]
        %v987 = vld [vmem:[#allocation2 + $0x38] sm:$0xff]
        %v988 = vpack.c.bf16 %v984, %v980
        %v989 = vpack.c.bf16 %v985, %v981
        %v990 = vpack.c.bf16 %v986, %v982
        %v991 = vpack.c.bf16 %v987, %v983
        %v992 = vld [vmem:[%s351] sm:$0xff]
        %v993 = vld [vmem:[%s351 + $0x8] sm:$0xff]
        %v994 = vld [vmem:[%s351 + $0x10] sm:$0xff]
        %v995 = vld [vmem:[%s351 + $0x18] sm:$0xff]
        %v996 = vld [vmem:[%s351 + $0x20] sm:$0xff]
        %v997 = vld [vmem:[%s351 + $0x28] sm:$0xff]
        %v998 = vld [vmem:[%s351 + $0x30] sm:$0xff]
        %v999 = vld [vmem:[%s351 + $0x38] sm:$0xff]
        %v1000 = vld [vmem:[%s351 + $0x40] sm:$0xff]
        %v1001 = vld [vmem:[%s351 + $0x48] sm:$0xff]
        %v1002 = vld [vmem:[%s351 + $0x50] sm:$0xff]
        %v1003 = vld [vmem:[%s351 + $0x58] sm:$0xff]
        %v1004 = vld [vmem:[%s351 + $0x60] sm:$0xff]
        %v1005 = vld [vmem:[%s351 + $0x68] sm:$0xff]
        %v1006 = vld [vmem:[%s351 + $0x70] sm:$0xff]
        %v1007 = vld [vmem:[%s351 + $0x78] sm:$0xff]
        %v1008 = vld [vmem:[%s351 + $0x80] sm:$0xff]
        %v1009 = vld [vmem:[%s351 + $0x88] sm:$0xff]
        %v1010 = vld [vmem:[%s351 + $0x90] sm:$0xff]
        %v1011 = vld [vmem:[%s351 + $0x98] sm:$0xff]
        %v1012 = vld [vmem:[%s351 + $0xa0] sm:$0xff]
        %v1013 = vld [vmem:[%s351 + $0xa8] sm:$0xff]
        %v1014 = vld [vmem:[%s351 + $0xb0] sm:$0xff]
        %v1015 = vld [vmem:[%s351 + $0xb8] sm:$0xff]
        %v1016 = vld [vmem:[%s351 + $0xc0] sm:$0xff]
        %v1017 = vld [vmem:[%s351 + $0xc8] sm:$0xff]
        %v1018 = vld [vmem:[%s351 + $0xd0] sm:$0xff]
        %v1019 = vld [vmem:[%s351 + $0xd8] sm:$0xff]
        %v1020 = vld [vmem:[%s351 + $0xe0] sm:$0xff]
        %v1021 = vld [vmem:[%s351 + $0xe8] sm:$0xff]
        %v1022 = vld [vmem:[%s351 + $0xf0] sm:$0xff]
        %v1023 = vld [vmem:[%s351 + $0xf8] sm:$0xff]
        %v1024 = vld [vmem:[%s351 + $0x100] sm:$0xff]
        %v1025 = vld [vmem:[%s351 + $0x108] sm:$0xff]
        %v1026 = vld [vmem:[%s351 + $0x110] sm:$0xff]
        %v1027 = vld [vmem:[%s351 + $0x118] sm:$0xff]
        %v1028 = vld [vmem:[%s351 + $0x120] sm:$0xff]
        %v1029 = vld [vmem:[%s351 + $0x128] sm:$0xff]
        %v1030 = vld [vmem:[%s351 + $0x130] sm:$0xff]
        %v1031 = vld [vmem:[%s351 + $0x138] sm:$0xff]
        %v1032 = vld [vmem:[%s351 + $0x140] sm:$0xff]
        %v1033 = vld [vmem:[%s351 + $0x148] sm:$0xff]
        %v1034 = vld [vmem:[%s351 + $0x150] sm:$0xff]
        %v1035 = vld [vmem:[%s351 + $0x158] sm:$0xff]
        %v1036 = vld [vmem:[%s351 + $0x160] sm:$0xff]
        %v1037 = vld [vmem:[%s351 + $0x168] sm:$0xff]
        %v1038 = vld [vmem:[%s351 + $0x170] sm:$0xff]
        %v1039 = vld [vmem:[%s351 + $0x178] sm:$0xff]
        %v1040 = vld [vmem:[%s351 + $0x180] sm:$0xff]
        %v1041 = vld [vmem:[%s351 + $0x188] sm:$0xff]
        %v1042 = vld [vmem:[%s362] sm:$0x3]
        %v1044 = vperm.slane %v1042, 0
        %v1045 = vperm.slane %v1042, 1
        %v1098 = vunpack.c.l.b16 %v992
        %v1099 = vunpack.c.h.b16 %v992
        %v1100 = vunpack.c.l.b16 %v993
        %v1101 = vunpack.c.h.b16 %v993
        %v1102 = vunpack.c.l.b16 %v994
        %v1103 = vunpack.c.h.b16 %v994
        %v1104 = vunpack.c.l.b16 %v995
        %v1105 = vunpack.c.h.b16 %v995
        %v1106 = vunpack.c.l.b16 %v996
        %v1107 = vunpack.c.h.b16 %v996
        %v1108 = vunpack.c.l.b16 %v997
        %v1109 = vunpack.c.h.b16 %v997
        %v1110 = vunpack.c.l.b16 %v998
        %v1111 = vunpack.c.h.b16 %v998
        %v1112 = vunpack.c.l.b16 %v999
        %v1113 = vunpack.c.h.b16 %v999
        %v1114 = vunpack.c.l.b16 %v1000
        %v1115 = vunpack.c.h.b16 %v1000
        %v1116 = vunpack.c.l.b16 %v1001
        %v1117 = vunpack.c.h.b16 %v1001
        %v1118 = vunpack.c.l.b16 %v1002
        %v1119 = vunpack.c.h.b16 %v1002
        %v1120 = vunpack.c.l.b16 %v1003
        %v1121 = vunpack.c.h.b16 %v1003
        %v1122 = vunpack.c.l.b16 %v1004
        %v1123 = vunpack.c.h.b16 %v1004
        %v1124 = vunpack.c.l.b16 %v1005
        %v1125 = vunpack.c.h.b16 %v1005
        %v1126 = vunpack.c.l.b16 %v1006
        %v1127 = vunpack.c.h.b16 %v1006
        %v1128 = vunpack.c.l.b16 %v1007
        %v1129 = vunpack.c.h.b16 %v1007
        %v1130 = vunpack.c.l.b16 %v1008
        %v1131 = vunpack.c.h.b16 %v1008
        %v1132 = vunpack.c.l.b16 %v1009
        %v1133 = vunpack.c.h.b16 %v1009
        %v1134 = vunpack.c.l.b16 %v1010
        %v1135 = vunpack.c.h.b16 %v1010
        %v1136 = vunpack.c.l.b16 %v1011
        %v1137 = vunpack.c.h.b16 %v1011
        %v1138 = vunpack.c.l.b16 %v1012
        %v1139 = vunpack.c.h.b16 %v1012
        %v1140 = vunpack.c.l.b16 %v1013
        %v1141 = vunpack.c.h.b16 %v1013
        %v1142 = vunpack.c.l.b16 %v1014
        %v1143 = vunpack.c.h.b16 %v1014
        %v1144 = vunpack.c.l.b16 %v1015
        %v1145 = vunpack.c.h.b16 %v1015
        %v1146 = vunpack.c.l.b16 %v1016
        %v1147 = vunpack.c.h.b16 %v1016
        %v1148 = vunpack.c.l.b16 %v1017
        %v1149 = vunpack.c.h.b16 %v1017
        %v1150 = vunpack.c.l.b16 %v1018
        %v1151 = vunpack.c.h.b16 %v1018
        %v1152 = vunpack.c.l.b16 %v1019
        %v1153 = vunpack.c.h.b16 %v1019
        %v1154 = vunpack.c.l.b16 %v1020
        %v1155 = vunpack.c.h.b16 %v1020
        %v1156 = vunpack.c.l.b16 %v1021
        %v1157 = vunpack.c.h.b16 %v1021
        %v1158 = vunpack.c.l.b16 %v1022
        %v1159 = vunpack.c.h.b16 %v1022
        %v1160 = vunpack.c.l.b16 %v1023
        %v1161 = vunpack.c.h.b16 %v1023
        %v1162 = vunpack.c.l.b16 %v1024
        %v1163 = vunpack.c.h.b16 %v1024
        %v1164 = vunpack.c.l.b16 %v1025
        %v1165 = vunpack.c.h.b16 %v1025
        %v1166 = vunpack.c.l.b16 %v1026
        %v1167 = vunpack.c.h.b16 %v1026
        %v1168 = vunpack.c.l.b16 %v1027
        %v1169 = vunpack.c.h.b16 %v1027
        %v1170 = vunpack.c.l.b16 %v1028
        %v1171 = vunpack.c.h.b16 %v1028
        %v1172 = vunpack.c.l.b16 %v1029
        %v1173 = vunpack.c.h.b16 %v1029
        %v1174 = vunpack.c.l.b16 %v1030
        %v1175 = vunpack.c.h.b16 %v1030
        %v1176 = vunpack.c.l.b16 %v1031
        %v1177 = vunpack.c.h.b16 %v1031
        %v1178 = vunpack.c.l.b16 %v1032
        %v1179 = vunpack.c.h.b16 %v1032
        %v1180 = vunpack.c.l.b16 %v1033
        %v1181 = vunpack.c.h.b16 %v1033
        %v1182 = vunpack.c.l.b16 %v1034
        %v1183 = vunpack.c.h.b16 %v1034
        %v1184 = vunpack.c.l.b16 %v1035
        %v1185 = vunpack.c.h.b16 %v1035
        %v1186 = vunpack.c.l.b16 %v1036
        %v1187 = vunpack.c.h.b16 %v1036
        %v1188 = vunpack.c.l.b16 %v1037
        %v1189 = vunpack.c.h.b16 %v1037
        %v1190 = vunpack.c.l.b16 %v1038
        %v1191 = vunpack.c.h.b16 %v1038
        %v1192 = vunpack.c.l.b16 %v1039
        %v1193 = vunpack.c.h.b16 %v1039
        %v1194 = vunpack.c.l.b16 %v1040
        %v1195 = vunpack.c.h.b16 %v1040
        %v1196 = vunpack.c.l.b16 %v1041
        %v1197 = vunpack.c.h.b16 %v1041
        %v1198 = vpack.c.b16 %v1100, %v1098
        %v1199 = vpack.c.b16 %v1101, %v1099
        %v1200 = vpack.c.b16 %v1104, %v1102
        %v1201 = vpack.c.b16 %v1105, %v1103
        %v1202 = vpack.c.b16 %v1108, %v1106
        %v1203 = vpack.c.b16 %v1109, %v1107
        %v1204 = vpack.c.b16 %v1112, %v1110
        %v1205 = vpack.c.b16 %v1113, %v1111
        %v1206 = vpack.c.b16 %v1116, %v1114
        %v1207 = vpack.c.b16 %v1117, %v1115
        %v1208 = vpack.c.b16 %v1120, %v1118
        %v1209 = vpack.c.b16 %v1121, %v1119
        %v1210 = vpack.c.b16 %v1124, %v1122
        %v1211 = vpack.c.b16 %v1125, %v1123
        %v1212 = vpack.c.b16 %v1128, %v1126
        %v1213 = vpack.c.b16 %v1129, %v1127
        %v1214 = vpack.c.b16 %v1132, %v1130
        %v1215 = vpack.c.b16 %v1133, %v1131
        %v1216 = vpack.c.b16 %v1136, %v1134
        %v1217 = vpack.c.b16 %v1137, %v1135
        %v1218 = vpack.c.b16 %v1140, %v1138
        %v1219 = vpack.c.b16 %v1141, %v1139
        %v1220 = vpack.c.b16 %v1144, %v1142
        %v1221 = vpack.c.b16 %v1145, %v1143
        %v1222 = vpack.c.b16 %v1148, %v1146
        %v1223 = vpack.c.b16 %v1149, %v1147
        %v1224 = vpack.c.b16 %v1152, %v1150
        %v1225 = vpack.c.b16 %v1153, %v1151
        %v1226 = vpack.c.b16 %v1156, %v1154
        %v1227 = vpack.c.b16 %v1157, %v1155
        %v1228 = vpack.c.b16 %v1160, %v1158
        %v1229 = vpack.c.b16 %v1161, %v1159
        %v1230 = vpack.c.b16 %v1164, %v1162
        %v1231 = vpack.c.b16 %v1165, %v1163
        %v1232 = vpack.c.b16 %v1168, %v1166
        %v1233 = vpack.c.b16 %v1169, %v1167
        %v1234 = vpack.c.b16 %v1172, %v1170
        %v1235 = vpack.c.b16 %v1173, %v1171
        %v1236 = vpack.c.b16 %v1176, %v1174
        %v1237 = vpack.c.b16 %v1177, %v1175
        %v1238 = vpack.c.b16 %v1180, %v1178
        %v1239 = vpack.c.b16 %v1181, %v1179
        %v1240 = vpack.c.b16 %v1184, %v1182
        %v1241 = vpack.c.b16 %v1185, %v1183
        %v1242 = vpack.c.b16 %v1188, %v1186
        %v1243 = vpack.c.b16 %v1189, %v1187
        %v1244 = vpack.c.b16 %v1192, %v1190
        %v1245 = vpack.c.b16 %v1193, %v1191
        %v1246 = vpack.c.b16 %v1196, %v1194
        %v1247 = vpack.c.b16 %v1197, %v1195
        %vm1298 = vcmask 130048
        %v1300 = vsel %vm1298, %v991, 0
        %1302 = vmatpush.bf16.msra.mxu0 %v1212
        %1303 = vmatpush.bf16.msra.mxu0 %v1210
        %1304 = vmatpush.bf16.msra.mxu0 %v1208
        %1305 = vmatpush.bf16.msra.mxu0 %v1206
        %1306 = vmatpush.bf16.msra.mxu0 %v1204
        %1307 = vmatpush.bf16.msra.mxu0 %v1202
        %1308 = vmatpush.bf16.msra.mxu0 %v1200
        %1309 = vmatpush.bf16.msra.mxu0 %v1198
        %1310 = vmatmul.bf16.gmra.mxu0 %v988
        %v1311 = vpop.f32.mrf.mxu0
        %v1312 = vadd.f32 %v1044, %v1311
        %v1313 = vpop.f32.mrf.mxu0
        %v1314 = vadd.f32 %v1044, %v1313
        %1315 = vdwg.mxu0
        %1316 = vmatpush.bf16.msra.mxu0 %v1228
        %1317 = vmatpush.bf16.msra.mxu0 %v1226
        %1318 = vmatpush.bf16.msra.mxu0 %v1224
        %1319 = vmatpush.bf16.msra.mxu0 %v1222
        %1320 = vmatpush.bf16.msra.mxu0 %v1220
        %1321 = vmatpush.bf16.msra.mxu0 %v1218
        %1322 = vmatpush.bf16.msra.mxu0 %v1216
        %1323 = vmatpush.bf16.msra.mxu0 %v1214
        %1324 = vmatmul.bf16.gmra.mxu0 %v989
        %v1325 = vpop.f32.mrf.mxu0
        %v1326 = vadd.f32 %v1312, %v1325
        %v1327 = vpop.f32.mrf.mxu0
        %v1328 = vadd.f32 %v1314, %v1327
        %1329 = vdwg.mxu0
        %1330 = vmatpush.bf16.msra.mxu0 %v1244
        %1331 = vmatpush.bf16.msra.mxu0 %v1242
        %1332 = vmatpush.bf16.msra.mxu0 %v1240
        %1333 = vmatpush.bf16.msra.mxu0 %v1238
        %1334 = vmatpush.bf16.msra.mxu0 %v1236
        %1335 = vmatpush.bf16.msra.mxu0 %v1234
        %1336 = vmatpush.bf16.msra.mxu0 %v1232
        %1337 = vmatpush.bf16.msra.mxu0 %v1230
        %1338 = vmatmul.bf16.gmra.mxu0 %v990
        %v1339 = vpop.f32.mrf.mxu0
        %v1340 = vadd.f32 %v1326, %v1339
        %v1341 = vpop.f32.mrf.mxu0
        %v1342 = vadd.f32 %v1328, %v1341
        %1343 = vdwg.mxu0
        %1344 = vmatpush.bf16.msra.mxu0 0
        %1345 = vmatpush.bf16.msra.mxu0 0
        %1346 = vmatpush.bf16.msra.mxu0 0
        %1347 = vmatpush.bf16.msra.mxu0 0
        %1348 = vmatpush.bf16.msra.mxu0 0
        %1349 = vmatpush.bf16.msra.mxu0 0
        %1350 = vmatpush.bf16.msra.mxu0 0
        %1351 = vmatpush.bf16.msra.mxu0 %v1246
        %1352 = vmatmul.bf16.gmra.mxu0 %v1300
        %v1353 = vpop.f32.mrf.mxu0
        %v1354 = vadd.f32 %v1340, %v1353
        %v1355 = vpop.f32.mrf.mxu0
        %v1356 = vadd.f32 %v1342, %v1355
        %1357 = vdwg.mxu0
        %1358 = vmatpush.bf16.msra.mxu0 %v1213
        %1359 = vmatpush.bf16.msra.mxu0 %v1211
        %1360 = vmatpush.bf16.msra.mxu0 %v1209
        %1361 = vmatpush.bf16.msra.mxu0 %v1207
        %1362 = vmatpush.bf16.msra.mxu0 %v1205
        %1363 = vmatpush.bf16.msra.mxu0 %v1203
        %1364 = vmatpush.bf16.msra.mxu0 %v1201
        %1365 = vmatpush.bf16.msra.mxu0 %v1199
        %1366 = vmatmul.bf16.gmra.mxu0 %v988
        %v1367 = vpop.f32.mrf.mxu0
        %v1368 = vadd.f32 %v1045, %v1367
        %v1369 = vpop.f32.mrf.mxu0
        %v1370 = vadd.f32 %v1045, %v1369
        %1371 = vdwg.mxu0
        %1372 = vmatpush.bf16.msra.mxu0 %v1229
        %1373 = vmatpush.bf16.msra.mxu0 %v1227
        %1374 = vmatpush.bf16.msra.mxu0 %v1225
        %1375 = vmatpush.bf16.msra.mxu0 %v1223
        %1376 = vmatpush.bf16.msra.mxu0 %v1221
        %1377 = vmatpush.bf16.msra.mxu0 %v1219
        %1378 = vmatpush.bf16.msra.mxu0 %v1217
        %1379 = vmatpush.bf16.msra.mxu0 %v1215
        %1380 = vmatmul.bf16.gmra.mxu0 %v989
        %v1381 = vpop.f32.mrf.mxu0
        %v1382 = vadd.f32 %v1368, %v1381
        %v1383 = vpop.f32.mrf.mxu0
        %v1384 = vadd.f32 %v1370, %v1383
        %1385 = vdwg.mxu0
        %1386 = vmatpush.bf16.msra.mxu0 %v1245
        %1387 = vmatpush.bf16.msra.mxu0 %v1243
        %1388 = vmatpush.bf16.msra.mxu0 %v1241
        %1389 = vmatpush.bf16.msra.mxu0 %v1239
        %1390 = vmatpush.bf16.msra.mxu0 %v1237
        %1391 = vmatpush.bf16.msra.mxu0 %v1235
        %1392 = vmatpush.bf16.msra.mxu0 %v1233
        %1393 = vmatpush.bf16.msra.mxu0 %v1231
        %1394 = vmatmul.bf16.gmra.mxu0 %v990
        %v1395 = vpop.f32.mrf.mxu0
        %v1396 = vadd.f32 %v1382, %v1395
        %v1397 = vpop.f32.mrf.mxu0
        %v1398 = vadd.f32 %v1384, %v1397
        %1399 = vdwg.mxu0
        %1400 = vmatpush.bf16.msra.mxu0 0
        %1401 = vmatpush.bf16.msra.mxu0 0
        %1402 = vmatpush.bf16.msra.mxu0 0
        %1403 = vmatpush.bf16.msra.mxu0 0
        %1404 = vmatpush.bf16.msra.mxu0 0
        %1405 = vmatpush.bf16.msra.mxu0 0
        %1406 = vmatpush.bf16.msra.mxu0 0
        %1407 = vmatpush.bf16.msra.mxu0 %v1247
        %1408 = vmatmul.bf16.gmra.mxu0 %v1300
        %v1409 = vpop.f32.mrf.mxu0
        %v1410 = vadd.f32 %v1396, %v1409
        %v1411 = vpop.f32.mrf.mxu0
        %v1412 = vadd.f32 %v1398, %v1411
        %1413 = vdwg.mxu0
        %v1414 = vmax.f32 %v1354, 0.0
        %v1415 = vmax.f32 %v1410, 0.0
        %v1416 = vmax.f32 %v1356, 0.0
        %v1417 = vmax.f32 %v1412, 0.0
        %1418 = vst [vmem:[%s374] sm:$0xff] %v1414
        %1419 = vst [vmem:[%s374 + $0x8] sm:$0xff] %v1415
        %1420 = vst [vmem:[%s374 + $0x10] sm:$0xff] %v1416
        %1421 = vst [vmem:[%s374 + $0x18] sm:$0xff] %v1417
      $region56: #{_forward_impl.1} parent=39 // pred_fallthru
        _
      %s1422 = ssub.s32 %s16, 1
      %p1423 = scmp.gt.s32.totalorder %s1422, 0
      %s1424 = scalar_select %p1423, %s1422, 0
      %s1425 = smul.u32 2, %s1424
      %p1426 = scmp.lt.s32.totalorder %s1425, 1
      %s1427 = scalar_select %p1426, %s1425, 1
      %s1428 = smul.addr %s1427, 8
      %s1429 = scalar_lea.vmem %s5, %s1428
      // Predicated region
      $region57: #{_forward_impl.1} parent=39 // pred_check
        %p1430 = pneg %p185
      $region58: #{_forward_impl.1} parent=39 // pred_check_branch
        %1432 = sbr.rel (%p1430) target = $region60
      $region59: #{_forward_impl.1} parent=39 // pred_region
        %s1433 = ssub.s32 %s16, 1
        %p1434 = scmp.gt.s32.totalorder %s1433, 0
        %s1435 = scalar_select %p1434, %s1433, 0
        %s1436 = smul.u32 2, %s1435
      $region60: #{_forward_impl.1} parent=39 // pred_fallthru
        _
    $region40: #{_forward_impl.1} parent=5 // pred_fallthru
      _
    %p1437 = scmp.le.s32.totalorder 2, %s11
    // Predicated region
    $region61: #{_forward_impl.1} parent=5 // pred_check
      %p1438 = pneg %p1437
    $region62: #{_forward_impl.1} parent=5 // pred_check_branch
      %1440 = sbr.rel (%p1438) target = $region64
    $region63: #{_forward_impl.1} parent=5 // pred_region
      %s1441 = ssub.s32 %s11, 2
      // Predicated region
      $region65: #{_forward_impl.1} parent=63 // pred_check
        %p1442 = pneg %p191
      $region66: #{_forward_impl.1} parent=63 // pred_check_branch
        %1444 = sbr.rel (%p1442) target = $region68
      $region67: #{_forward_impl.1} parent=63 // pred_region
        %s1445 = ssub.s32 %s17, 1
        %p1446 = scmp.gt.s32.totalorder %s1445, 0
        %s1447 = scalar_select %p1446, %s1445, 0
        %s1448 = smul.u32 2, %s1447
        %p1449 = scmp.lt.s32.totalorder %s1448, 1
        %s1450 = scalar_select %p1449, %s1448, 1
        %s1451 = smul.addr %s1450, 8
        %s1452 = scalar_lea.vmem %s5, %s1451
      $region68: #{_forward_impl.1} parent=63 // pred_fallthru
        _
    $region64: #{_forward_impl.1} parent=5 // pred_fallthru
      _
  $region6: #{_forward_impl.1} parent=0 // loop_footer
    %s15 = sadd.s32 1, %s11
  $region7: #{_forward_impl.1} parent=0 // loop_footer_branch
    %10 = sbr.rel target = $region3
  $region8: #{_forward_impl.1} parent=0 // loop_exit
    _

</llo_original>
